<compile_context>
chip_gen: v7x
topology: tpu7x:2x2x1
jax: 0.10.0
libtpu: 0.0.40
codegen_flags: <defaults>
</compile_context>

<pallas_src>
import functools

import jax
import jax.numpy as jnp
from jax.experimental import pallas as pl
from jax.experimental.pallas import tpu as pltpu

EMBED_DIM = 32        # self.embed_dim in the PyTorch module
HYPERNET_EMBED = 64   # hypernet_embed in the PyTorch module


def _round_up(x, m):
    return ((x + m - 1) // m) * m


def _qmixer_kernel(qs_ref, s_ref,
                   w1_ref, b1_ref,      # fused layer-1: (state_dim, 2*H+2*E), (1, 2*H+2*E)
                   w2_ref, b2_ref,      # fused layer-2 (block-diag): (2*H, A*E+E), (1, A*E+E)
                   wv_ref, bv_ref,      # V head tail: (1, E), (1, 1)
                   out_ref, *, n_agents, embed_dim, hypernet_embed):
    s = s_ref[...]                       # (TILE_B, state_dim)
    qs = qs_ref[...]                     # (TILE_B, n_agents)
    he2 = 2 * hypernet_embed

    # ---- fused first layers (one MXU matmul, f32 accumulate) -------------------
    # columns: [hyper_w_1 L0 | hyper_w_final L0 | V L0 | hyper_b_1]
    h = jnp.dot(s, w1_ref[...], preferred_element_type=jnp.float32) + b1_ref[...]
    hr = jnp.maximum(h, 0.0)

    f12 = hr[:, :he2]                                     # [e1 | e2]   (TILE_B, 128)
    e3 = hr[:, he2:he2 + embed_dim]                       # V hidden    (TILE_B, E)
    b1 = h[:, he2 + embed_dim:he2 + 2 * embed_dim]        # hyper_b_1   (TILE_B, E), no ReLU

    # ---- fused second layers (block-diagonal weights, one MXU matmul) ----------
    # g[:, :A*E] = w1 (flattened per-agent rows), g[:, A*E:A*E+E] = w_final
    g = jnp.dot(f12, w2_ref[...], preferred_element_type=jnp.float32) + b2_ref[...]

    # ---- bmm(agent_qs (B,1,A), w1 (B,A,E)): per-agent scale + add (VPU) --------
    acc = b1
    for a in range(n_agents):                              # static unroll
        acc = acc + qs[:, a:a + 1] * g[:, a * embed_dim:(a + 1) * embed_dim]
    # ELU (alpha = 1); exp on min(x,0) avoids overflow in the non-selected branch.
    hidden = jnp.where(acc > 0.0, acc, jnp.exp(jnp.minimum(acc, 0.0)) - 1.0)

    w_final = g[:, n_agents * embed_dim:(n_agents + 1) * embed_dim]

    # ---- V head tail + final mix: VPU mul + lane reduce (no N=1 matmuls) -------
    v = jnp.sum(e3 * wv_ref[...], axis=-1, keepdims=True) + bv_ref[...]
    y = jnp.sum(hidden * w_final, axis=-1, keepdims=True) + v      # (TILE_B, 1)
    out_ref[...] = y.astype(out_ref.dtype)


def qmixer_nonmonotonic_forward(agent_qs, states, params, *, tile_b=1024):
    """agent_qs: (bs, n_agents); states: (bs, T, state_dim). Returns (bs, 1, 1)."""
    (w_h1a, b_h1a, w_h1b, b_h1b,
     w_b1, b_b1,
     w_hfa, b_hfa, w_hfb, b_hfb,
     w_va, b_va, w_vb, b_vb) = params

    f32 = jnp.float32
    bs = agent_qs.shape[0]
    n_agents = agent_qs.shape[-1]
    state_dim = states.shape[-1]
    embed_dim = w_b1.shape[-1]
    hypernet_embed = w_h1a.shape[-1]

    s = states[:, 0].reshape(-1, state_dim).astype(f32)
    q = agent_qs.reshape(-1, n_agents).astype(f32)
    B = q.shape[0]

    # ---- fuse the small hypernet weights outside the kernel (tiny, one-time) ----
    # layer-1: [hyper_w_1 L0 (H) | hyper_w_final L0 (H) | V L0 (E) | hyper_b_1 (E)]
    w1_cat = jnp.concatenate([w_h1a, w_hfa, w_va, w_b1], axis=1).astype(f32)
    b1_cat = jnp.concatenate([b_h1a, b_hfa, b_va, b_b1], axis=1).astype(f32)
    # layer-2: block-diag [[w_h1b, 0], [0, w_hfb]]  -> (2H, A*E + E)
    w2_cat = jnp.concatenate([
        jnp.concatenate([w_h1b.astype(f32),
                         jnp.zeros((hypernet_embed, embed_dim), f32)], axis=1),
        jnp.concatenate([jnp.zeros((hypernet_embed, embed_dim * n_agents), f32),
                         w_hfb.astype(f32)], axis=1),
    ], axis=0)
    b2_cat = jnp.concatenate([b_h1b, b_hfb], axis=1).astype(f32)
    w_vb_row = w_vb.reshape(1, embed_dim).astype(f32)
    b_vb_row = b_vb.reshape(1, 1).astype(f32)

    # Batch tiling: TILE_B multiple of 8 sublanes; pad batch to a whole number of tiles.
    tile_b = min(tile_b, _round_up(B, 8))
    b_pad = _round_up(B, tile_b)
    if b_pad != B:
        s = jnp.pad(s, ((0, b_pad - B), (0, 0)))
        q = jnp.pad(q, ((0, b_pad - B), (0, 0)))
    num_tiles = b_pad // tile_b

    def row_spec(d):
        return pl.BlockSpec((tile_b, d), lambda i: (i, 0))

    def res_spec(shape):  # VMEM-resident weight: same block every grid step
        return pl.BlockSpec(shape, lambda i: (0, 0))

    kernel = functools.partial(_qmixer_kernel, n_agents=n_agents,
                               embed_dim=embed_dim, hypernet_embed=hypernet_embed)

    out = pl.pallas_call(
        kernel,
        out_shape=jax.ShapeDtypeStruct((b_pad, 1), jnp.float32),
        grid=(num_tiles,),
        in_specs=[
            row_spec(n_agents),              # agent_qs tile
            row_spec(state_dim),             # states tile
            res_spec(w1_cat.shape), res_spec(b1_cat.shape),
            res_spec(w2_cat.shape), res_spec(b2_cat.shape),
            res_spec(w_vb_row.shape), res_spec(b_vb_row.shape),
        ],
        out_specs=pl.BlockSpec((tile_b, 1), lambda i: (i, 0)),
        compiler_params=pltpu.CompilerParams(
            dimension_semantics=("parallel",),
            vmem_limit_bytes=32 * 1024 * 1024,
        ),
    )(q, s, w1_cat, b1_cat, w2_cat, b2_cat, w_vb_row, b_vb_row)

    return out[:B].reshape(bs, -1, 1)


def init_params(key, num_state, num_agent,
                embed_dim=EMBED_DIM, hypernet_embed=HYPERNET_EMBED):
    """PyTorch nn.Linear-style init. Weights stored (in, out); biases as (1, out)."""
    ks = jax.random.split(key, 14)

    def lin(kw, kb, fan_in, fan_out):
        bound = 1.0 / jnp.sqrt(jnp.float32(fan_in))
        w = jax.random.uniform(kw, (fan_in, fan_out), jnp.float32, -bound, bound)
        b = jax.random.uniform(kb, (1, fan_out), jnp.float32, -bound, bound)
        return w, b

    w_h1a, b_h1a = lin(ks[0], ks[1], num_state, hypernet_embed)
    w_h1b, b_h1b = lin(ks[2], ks[3], hypernet_embed, embed_dim * num_agent)
    w_b1,  b_b1  = lin(ks[4], ks[5], num_state, embed_dim)
    w_hfa, b_hfa = lin(ks[6], ks[7], num_state, hypernet_embed)
    w_hfb, b_hfb = lin(ks[8], ks[9], hypernet_embed, embed_dim)
    w_va,  b_va  = lin(ks[10], ks[11], num_state, embed_dim)
    w_vb_col, b_vb = lin(ks[12], ks[13], embed_dim, 1)
    w_vb = w_vb_col.reshape(1, embed_dim)   # row form for the VPU dot in-kernel
    return (w_h1a, b_h1a, w_h1b, b_h1b,
            w_b1, b_b1,
            w_hfa, b_hfa, w_hfb, b_hfb,
            w_va, b_va, w_vb, b_vb)


def _reference(agent_qs, states, params):
    """Pure-JAX replica of the PyTorch forward."""
    (w_h1a, b_h1a, w_h1b, b_h1b,
     w_b1, b_b1,
     w_hfa, b_hfa, w_hfb, b_hfb,
     w_va, b_va, w_vb, b_vb) = params
    bs = agent_qs.shape[0]
    n_agents = agent_qs.shape[-1]
    state_dim = states.shape[-1]
    embed_dim = w_b1.shape[-1]

    s = states[:, 0].reshape(-1, state_dim)
    q = agent_qs.reshape(-1, 1, n_agents)

    e1 = jnp.maximum(s @ w_h1a + b_h1a, 0.0)
    w1 = (e1 @ w_h1b + b_h1b).reshape(-1, n_agents, embed_dim)
    b1 = (s @ w_b1 + b_b1).reshape(-1, 1, embed_dim)
    hidden = jax.nn.elu(jnp.matmul(q, w1) + b1)

    e2 = jnp.maximum(s @ w_hfa + b_hfa, 0.0)
    w_final = (e2 @ w_hfb + b_hfb).reshape(-1, embed_dim, 1)

    e3 = jnp.maximum(s @ w_va + b_va, 0.0)
    v = (jnp.sum(e3 * w_vb, axis=-1, keepdims=True) + b_vb).reshape(-1, 1, 1)

    y = jnp.matmul(hidden, w_final) + v
    return y.reshape(bs, -1, 1)


if __name__ == "__main__":
    # Small shapes consistent with the module:
    # QMixer_nonmonotonic(num_state=12, num_action=6, num_agent=4, num_hidden=32, device=...)
    num_state, num_agent = 12, 4
    bs, ep_len = 8, 3

    key = jax.random.PRNGKey(0)
    k_params, k_q, k_s = jax.random.split(key, 3)

    params = init_params(k_params, num_state, num_agent)
    agent_qs = jax.random.normal(k_q, (bs, num_agent), jnp.float32)
    states = jax.random.normal(k_s, (bs, ep_len, num_state), jnp.float32)

    q_tot = qmixer_nonmonotonic_forward(agent_qs, states, params)
    jax.block_until_ready(q_tot)

    q_ref = _reference(agent_qs, states, params)
    assert q_tot.shape == (bs, 1, 1), q_tot.shape
    assert jnp.allclose(q_tot, q_ref, atol=2e-4, rtol=2e-4), (
        float(jnp.max(jnp.abs(q_tot - q_ref))))

    print("KERNEL_OK")
</pallas_src>

<mosaic_0001>
module attributes {stable_mosaic.version = 11 : i64} {
  func.func @_qmixer_kernel(%arg0: i32, %arg1: memref<8x4xf32, #tpu.memory_space<vmem>>, %arg2: memref<8x12xf32, #tpu.memory_space<vmem>>, %arg3: memref<12x192xf32, #tpu.memory_space<vmem>>, %arg4: memref<1x192xf32, #tpu.memory_space<vmem>>, %arg5: memref<128x160xf32, #tpu.memory_space<vmem>>, %arg6: memref<1x160xf32, #tpu.memory_space<vmem>>, %arg7: memref<1x32xf32, #tpu.memory_space<vmem>>, %arg8: memref<1x1xf32, #tpu.memory_space<vmem>>, %arg9: memref<8x1xf32, #tpu.memory_space<vmem>>) attributes {dimension_semantics = [#tpu.dimension_semantics<parallel>], iteration_bounds = array<i64: 1>, scalar_prefetch = 0 : i64, scratch_operands = 0 : i64, tpu.core_type = #tpu.core_type<tc>, window_params = [{transform_indices = @transform_0, window_bounds = array<i64: 8, 4>}, {transform_indices = @transform_1, window_bounds = array<i64: 8, 12>}, {pipeline_mode = #tpu.pipeline_mode<synchronous>, transform_indices = @transform_2, window_bounds = array<i64: 12, 192>}, {pipeline_mode = #tpu.pipeline_mode<synchronous>, transform_indices = @transform_3, window_bounds = array<i64: 1, 192>}, {pipeline_mode = #tpu.pipeline_mode<synchronous>, transform_indices = @transform_4, window_bounds = array<i64: 128, 160>}, {pipeline_mode = #tpu.pipeline_mode<synchronous>, transform_indices = @transform_5, window_bounds = array<i64: 1, 160>}, {pipeline_mode = #tpu.pipeline_mode<synchronous>, transform_indices = @transform_6, window_bounds = array<i64: 1, 32>}, {pipeline_mode = #tpu.pipeline_mode<synchronous>, transform_indices = @transform_7, window_bounds = array<i64: 1, 1>}, {transform_indices = @transform_8, window_bounds = array<i64: 8, 1>}]} {
    %c0 = arith.constant 0 : index
    %c0_0 = arith.constant 0 : index
    %0 = vector.load %arg2[%c0, %c0_0] : memref<8x12xf32, #tpu.memory_space<vmem>>, vector<8x12xf32>
    %c0_1 = arith.constant 0 : index
    %c0_2 = arith.constant 0 : index
    %1 = vector.load %arg1[%c0_1, %c0_2] : memref<8x4xf32, #tpu.memory_space<vmem>>, vector<8x4xf32>
    %c0_3 = arith.constant 0 : index
    %c0_4 = arith.constant 0 : index
    %2 = vector.load %arg3[%c0_3, %c0_4] : memref<12x192xf32, #tpu.memory_space<vmem>>, vector<12x192xf32>
    %cst = arith.constant dense<0.000000e+00> : vector<8x192xf32>
    %3 = tpu.matmul %0, %2, %cst {dimension_numbers = #tpu.dot_dimension_numbers<[1], [0], [0], [1], [0, 0, 1, 1], [], []>} : vector<8x12xf32>, vector<12x192xf32>, vector<8x192xf32> -> vector<8x192xf32>
    %c0_5 = arith.constant 0 : index
    %c0_6 = arith.constant 0 : index
    %4 = vector.load %arg4[%c0_5, %c0_6] : memref<1x192xf32, #tpu.memory_space<vmem>>, vector<1x192xf32>
    %5 = vector.broadcast %4 : vector<1x192xf32> to vector<8x192xf32>
    %6 = arith.addf %3, %5 : vector<8x192xf32>
    %cst_7 = arith.constant 0.000000e+00 : f32
    %7 = vector.broadcast %cst_7 : f32 to vector<8x192xf32>
    %8 = arith.maximumf %6, %7 : vector<8x192xf32>
    %9 = vector.extract_strided_slice %8 {offsets = [0, 0], sizes = [8, 128], strides = [1, 1]} : vector<8x192xf32> to vector<8x128xf32>
    %10 = vector.extract_strided_slice %8 {offsets = [0, 128], sizes = [8, 32], strides = [1, 1]} : vector<8x192xf32> to vector<8x32xf32>
    %11 = vector.extract_strided_slice %6 {offsets = [0, 160], sizes = [8, 32], strides = [1, 1]} : vector<8x192xf32> to vector<8x32xf32>
    %c0_8 = arith.constant 0 : index
    %c0_9 = arith.constant 0 : index
    %12 = vector.load %arg5[%c0_8, %c0_9] : memref<128x160xf32, #tpu.memory_space<vmem>>, vector<128x160xf32>
    %cst_10 = arith.constant dense<0.000000e+00> : vector<8x160xf32>
    %13 = tpu.matmul %9, %12, %cst_10 {dimension_numbers = #tpu.dot_dimension_numbers<[1], [0], [0], [1], [0, 0, 1, 1], [], []>} : vector<8x128xf32>, vector<128x160xf32>, vector<8x160xf32> -> vector<8x160xf32>
    %c0_11 = arith.constant 0 : index
    %c0_12 = arith.constant 0 : index
    %14 = vector.load %arg6[%c0_11, %c0_12] : memref<1x160xf32, #tpu.memory_space<vmem>>, vector<1x160xf32>
    %15 = vector.broadcast %14 : vector<1x160xf32> to vector<8x160xf32>
    %16 = arith.addf %13, %15 : vector<8x160xf32>
    %17 = vector.extract_strided_slice %1 {offsets = [0, 0], sizes = [8, 1], strides = [1, 1]} : vector<8x4xf32> to vector<8x1xf32>
    %18 = vector.extract_strided_slice %16 {offsets = [0, 0], sizes = [8, 32], strides = [1, 1]} : vector<8x160xf32> to vector<8x32xf32>
    %19 = vector.broadcast %17 : vector<8x1xf32> to vector<8x32xf32>
    %20 = arith.mulf %19, %18 : vector<8x32xf32>
    %21 = arith.addf %11, %20 : vector<8x32xf32>
    %22 = vector.extract_strided_slice %1 {offsets = [0, 1], sizes = [8, 1], strides = [1, 1]} : vector<8x4xf32> to vector<8x1xf32>
    %23 = vector.extract_strided_slice %16 {offsets = [0, 32], sizes = [8, 32], strides = [1, 1]} : vector<8x160xf32> to vector<8x32xf32>
    %24 = vector.broadcast %22 : vector<8x1xf32> to vector<8x32xf32>
    %25 = arith.mulf %24, %23 : vector<8x32xf32>
    %26 = arith.addf %21, %25 : vector<8x32xf32>
    %27 = vector.extract_strided_slice %1 {offsets = [0, 2], sizes = [8, 1], strides = [1, 1]} : vector<8x4xf32> to vector<8x1xf32>
    %28 = vector.extract_strided_slice %16 {offsets = [0, 64], sizes = [8, 32], strides = [1, 1]} : vector<8x160xf32> to vector<8x32xf32>
    %29 = vector.broadcast %27 : vector<8x1xf32> to vector<8x32xf32>
    %30 = arith.mulf %29, %28 : vector<8x32xf32>
    %31 = arith.addf %26, %30 : vector<8x32xf32>
    %32 = vector.extract_strided_slice %1 {offsets = [0, 3], sizes = [8, 1], strides = [1, 1]} : vector<8x4xf32> to vector<8x1xf32>
    %33 = vector.extract_strided_slice %16 {offsets = [0, 96], sizes = [8, 32], strides = [1, 1]} : vector<8x160xf32> to vector<8x32xf32>
    %34 = vector.broadcast %32 : vector<8x1xf32> to vector<8x32xf32>
    %35 = arith.mulf %34, %33 : vector<8x32xf32>
    %36 = arith.addf %31, %35 : vector<8x32xf32>
    %cst_13 = arith.constant 0.000000e+00 : f32
    %37 = vector.broadcast %cst_13 : f32 to vector<8x32xf32>
    %38 = arith.cmpf ogt, %36, %37 : vector<8x32xf32>
    %cst_14 = arith.constant 0.000000e+00 : f32
    %39 = vector.broadcast %cst_14 : f32 to vector<8x32xf32>
    %40 = arith.minimumf %36, %39 : vector<8x32xf32>
    %41 = math.exp %40 : vector<8x32xf32>
    %cst_15 = arith.constant 1.000000e+00 : f32
    %42 = vector.broadcast %cst_15 : f32 to vector<8x32xf32>
    %43 = arith.subf %41, %42 : vector<8x32xf32>
    %44 = arith.select %38, %36, %43 : vector<8x32xi1>, vector<8x32xf32>
    %45 = vector.extract_strided_slice %16 {offsets = [0, 128], sizes = [8, 32], strides = [1, 1]} : vector<8x160xf32> to vector<8x32xf32>
    %c0_16 = arith.constant 0 : index
    %c0_17 = arith.constant 0 : index
    %46 = vector.load %arg7[%c0_16, %c0_17] : memref<1x32xf32, #tpu.memory_space<vmem>>, vector<1x32xf32>
    %47 = vector.broadcast %46 : vector<1x32xf32> to vector<8x32xf32>
    %48 = arith.mulf %10, %47 : vector<8x32xf32>
    %cst_18 = arith.constant dense<0.000000e+00> : vector<8xf32>
    %49 = vector.multi_reduction <add>, %48, %cst_18 [1] : vector<8x32xf32> to vector<8xf32>
    %50 = vector.shape_cast %49 : vector<8xf32> to vector<8x1xf32>
    %c0_19 = arith.constant 0 : index
    %c0_20 = arith.constant 0 : index
    %51 = vector.load %arg8[%c0_19, %c0_20] : memref<1x1xf32, #tpu.memory_space<vmem>>, vector<1x1xf32>
    %52 = vector.broadcast %51 : vector<1x1xf32> to vector<8x1xf32>
    %53 = arith.addf %50, %52 : vector<8x1xf32>
    %54 = arith.mulf %44, %45 : vector<8x32xf32>
    %cst_21 = arith.constant dense<0.000000e+00> : vector<8xf32>
    %55 = vector.multi_reduction <add>, %54, %cst_21 [1] : vector<8x32xf32> to vector<8xf32>
    %56 = vector.shape_cast %55 : vector<8xf32> to vector<8x1xf32>
    %57 = arith.addf %56, %53 : vector<8x1xf32>
    %c0_22 = arith.constant 0 : index
    %c0_23 = arith.constant 0 : index
    %58 = vector.load %arg9[%c0_22, %c0_23] : memref<8x1xf32, #tpu.memory_space<vmem>>, vector<8x1xf32>
    tpu.vector_store %arg9[%c0_22, %c0_23], %57 {strides = array<i32>} : memref<8x1xf32, #tpu.memory_space<vmem>>, vector<8x1xf32>,
    return
  }
  func.func @transform_0(%arg0: i32) -> (i32, i32) {
    %c0_i32 = arith.constant 0 : i32
    %c0_i32_0 = arith.constant 0 : i32
    return %arg0, %c0_i32 : i32, i32
  }
  func.func @transform_1(%arg0: i32) -> (i32, i32) {
    %c0_i32 = arith.constant 0 : i32
    %c0_i32_0 = arith.constant 0 : i32
    return %arg0, %c0_i32 : i32, i32
  }
  func.func @transform_2(%arg0: i32) -> (i32, i32) {
    %c0_i32 = arith.constant 0 : i32
    %c0_i32_0 = arith.constant 0 : i32
    %c0_i32_1 = arith.constant 0 : i32
    return %c0_i32, %c0_i32_0 : i32, i32
  }
  func.func @transform_3(%arg0: i32) -> (i32, i32) {
    %c0_i32 = arith.constant 0 : i32
    %c0_i32_0 = arith.constant 0 : i32
    %c0_i32_1 = arith.constant 0 : i32
    return %c0_i32, %c0_i32_0 : i32, i32
  }
  func.func @transform_4(%arg0: i32) -> (i32, i32) {
    %c0_i32 = arith.constant 0 : i32
    %c0_i32_0 = arith.constant 0 : i32
    %c0_i32_1 = arith.constant 0 : i32
    return %c0_i32, %c0_i32_0 : i32, i32
  }
  func.func @transform_5(%arg0: i32) -> (i32, i32) {
    %c0_i32 = arith.constant 0 : i32
    %c0_i32_0 = arith.constant 0 : i32
    %c0_i32_1 = arith.constant 0 : i32
    return %c0_i32, %c0_i32_0 : i32, i32
  }
  func.func @transform_6(%arg0: i32) -> (i32, i32) {
    %c0_i32 = arith.constant 0 : i32
    %c0_i32_0 = arith.constant 0 : i32
    %c0_i32_1 = arith.constant 0 : i32
    return %c0_i32, %c0_i32_0 : i32, i32
  }
  func.func @transform_7(%arg0: i32) -> (i32, i32) {
    %c0_i32 = arith.constant 0 : i32
    %c0_i32_0 = arith.constant 0 : i32
    %c0_i32_1 = arith.constant 0 : i32
    return %c0_i32, %c0_i32_0 : i32, i32
  }
  func.func @transform_8(%arg0: i32) -> (i32, i32) {
    %c0_i32 = arith.constant 0 : i32
    %c0_i32_0 = arith.constant 0 : i32
    return %arg0, %c0_i32 : i32, i32
  }
}

</mosaic_0001>

<llo_original>
// kernel: tpu_custom_call.1
$region0: #{tpu_custom_call.1}
  #allocation0 [shape = 'u32[]', space=smem, size = 0x4, offset = 0x4, fixed_abs, tag = 'smem constant byte address 0x4 - core index']
  #allocation1 [shape = 'u32[144,128]{1,0:T(1,128)}', space=vmem, size = 0x12000, scoped, tag = 'internal scratch']
  #allocation2 [shape = 'f32[1,1]{1,0:T(1,128)S(1)}', space=vmem, size = 0x200, scoped, tag = 'scoped memory for tpu_custom_call.1']
  %s0 = inlined_call_operand.vmem [shape: f32[8,4], index: 0, kind: input, shape index: {}]
  %s1 = inlined_call_operand.vmem [shape: f32[8,12], index: 1, kind: input, shape index: {}]
  %s2 = inlined_call_operand.vmem [shape: f32[12,192], index: 2, kind: input, shape index: {}]
  %s3 = inlined_call_operand.vmem [shape: f32[1,192], index: 3, kind: input, shape index: {}]
  %s4 = inlined_call_operand.vmem [shape: f32[128,160], index: 4, kind: input, shape index: {}]
  %s5 = inlined_call_operand.vmem [shape: f32[1,160], index: 5, kind: input, shape index: {}]
  %s6 = inlined_call_operand.vmem [shape: f32[1,32], index: 6, kind: input, shape index: {}]
  %s7 = inlined_call_operand.<no memory space> [shape: f32[1,1], index: 7, kind: input, shape index: {}]
  %s8 = inlined_call_operand.vmem [shape: f32[8,1], index: 8, kind: output, shape index: {}]
  %s9 = sld [smem:[#allocation0]]
  $region42: #{tpu_custom_call.1} parent=0
    _
  %s11 = ssub.s32 1, %s9
  %s12 = scalar_select 0, %s11, %s9
  %v13 = vstv %s7
  %14 = vst [vmem:[#allocation2] sm:$0x1] %v13
  // Predicated region
  $region2: #{tpu_custom_call.1} parent=0 // pred_check
    _
  $region3: #{tpu_custom_call.1} parent=0 // pred_check_branch
    %16 = sbr.rel (0) target = $region5
  $region4: #{tpu_custom_call.1} parent=0 // pred_region
    _
  $region5: #{tpu_custom_call.1} parent=0 // pred_fallthru
    _
  // Predicated region
  $region6: #{tpu_custom_call.1} parent=0 // pred_check
    _
  $region7: #{tpu_custom_call.1} parent=0 // pred_check_branch
    %18 = sbr.rel (0) target = $region9
  $region8: #{tpu_custom_call.1} parent=0 // pred_region
    _
  $region9: #{tpu_custom_call.1} parent=0 // pred_fallthru
    _
  // Predicated region
  $region10: #{tpu_custom_call.1} parent=0 // pred_check
    _
  $region11: #{tpu_custom_call.1} parent=0 // pred_check_branch
    %20 = sbr.rel (0) target = $region13
  $region12: #{tpu_custom_call.1} parent=0 // pred_region
    _
  $region13: #{tpu_custom_call.1} parent=0 // pred_fallthru
    _
  // Predicated region
  $region14: #{tpu_custom_call.1} parent=0 // pred_check
    _
  $region15: #{tpu_custom_call.1} parent=0 // pred_check_branch
    %22 = sbr.rel (0) target = $region17
  $region16: #{tpu_custom_call.1} parent=0 // pred_region
    _
  $region17: #{tpu_custom_call.1} parent=0 // pred_fallthru
    _
  // Predicated region
  $region18: #{tpu_custom_call.1} parent=0 // pred_check
    _
  $region19: #{tpu_custom_call.1} parent=0 // pred_check_branch
    %24 = sbr.rel (0) target = $region21
  $region20: #{tpu_custom_call.1} parent=0 // pred_region
    _
  $region21: #{tpu_custom_call.1} parent=0 // pred_fallthru
    _
  // Predicated region
  $region22: #{tpu_custom_call.1} parent=0 // pred_check
    _
  $region23: #{tpu_custom_call.1} parent=0 // pred_check_branch
    %26 = sbr.rel (0) target = $region25
  $region24: #{tpu_custom_call.1} parent=0 // pred_region
    _
  $region25: #{tpu_custom_call.1} parent=0 // pred_fallthru
    _
  // Predicated region
  $region26: #{tpu_custom_call.1} parent=0 // pred_check
    _
  $region27: #{tpu_custom_call.1} parent=0 // pred_check_branch
    %28 = sbr.rel (0) target = $region29
  $region28: #{tpu_custom_call.1} parent=0 // pred_region
    _
  $region29: #{tpu_custom_call.1} parent=0 // pred_fallthru
    _
  // Predicated region
  $region30: #{tpu_custom_call.1} parent=0 // pred_check
    _
  $region31: #{tpu_custom_call.1} parent=0 // pred_check_branch
    %30 = sbr.rel (0) target = $region33
  $region32: #{tpu_custom_call.1} parent=0 // pred_region
    _
  $region33: #{tpu_custom_call.1} parent=0 // pred_fallthru
    _
  %v31 = vld [vmem:[%s1] sm:$0xff]
  %v32 = vld [vmem:[%s0] sm:$0xff]
  %v33 = vld [vmem:[%s2] sm:$0xff]
  %v34 = vld [vmem:[%s2 + $0x8] sm:$0xff]
  %v35 = vld [vmem:[%s2 + $0x10] sm:$0xf]
  %v36 = vld [vmem:[%s2 + $0x18] sm:$0xf]
  %v37 = vld [vmem:[%s3] sm:$0x3]
  %v39 = vlaneseq
  %v40 = vshrl.u32 %v39, 7
  %v41 = vsub.s32 0, %v40
  %v42 = vrot.slane %v37, %v41
  %v43 = vlaneseq
  %v44 = vshrl.u32 %v43, 7
  %v45 = vsub.s32 1, %v44
  %v46 = vrot.slane %v37, %v45
  %vm49 = vcmask 97280
  %v51 = vsel %vm49, %v31, 0
  %vm53 = vcmask 1043456
  %v55 = vsel %vm53, %v35, 0
  %v58 = vsel %vm53, %v36, 0
  %60 = vmatprep.subr.mxu0 %v34
  %61 = vmatpush1.msra.mxu0 %v33
  %62 = vmatprep.subr.mxu0 %v58
  %63 = vmatpush1.msra.mxu0 %v55
  %64 = vmatprep.subr.mxu0 0.0
  %65 = vmatpush1.msra.mxu0 0.0
  %66 = vmatprep.subr.mxu0 0.0
  %67 = vmatpush1.msra.mxu0 0.0
  %68 = vmatprep.subr.mxu0 0.0
  %69 = vmatpush1.msra.mxu0 0.0
  %70 = vmatprep.subr.mxu0 0.0
  %71 = vmatpush1.msra.mxu0 0.0
  %72 = vmatprep.subr.mxu0 0.0
  %73 = vmatpush1.msra.mxu0 0.0
  %74 = vmatprep.subr.mxu0 0.0
  %75 = vmatpush1.msra.mxu0 0.0
  %76 = vmatprep.subr.mxu0 0.0
  %77 = vmatpush1.msra.mxu0 0.0
  %78 = vmatprep.subr.mxu0 0.0
  %79 = vmatpush1.msra.mxu0 0.0
  %80 = vmatprep.subr.mxu0 0.0
  %81 = vmatpush1.msra.mxu0 0.0
  %82 = vmatprep.subr.mxu0 0.0
  %83 = vmatpush1.msra.mxu0 0.0
  %84 = vmatprep.subr.mxu0 0.0
  %85 = vmatpush1.msra.mxu0 0.0
  %86 = vmatprep.subr.mxu0 0.0
  %87 = vmatpush1.msra.mxu0 0.0
  %88 = vmatprep.subr.mxu0 0.0
  %89 = vmatpush1.msra.mxu0 0.0
  %90 = vmatprep.subr.mxu0 0.0
  %91 = vmatpush1.msra.mxu0 0.0
  %92 = vmatprep.subr.mxu0 0.0
  %93 = vmatpush1.msra.mxu0 0.0
  %94 = vmatprep.subr.mxu0 0.0
  %95 = vmatpush1.msra.mxu0 0.0
  %96 = vmatprep.subr.mxu0 0.0
  %97 = vmatpush1.msra.mxu0 0.0
  %98 = vmatprep.subr.mxu0 0.0
  %99 = vmatpush1.msra.mxu0 0.0
  %100 = vmatprep.subr.mxu0 0.0
  %101 = vmatpush1.msra.mxu0 0.0
  %102 = vmatprep.subr.mxu0 0.0
  %103 = vmatpush1.msra.mxu0 0.0
  %104 = vmatprep.subr.mxu0 0.0
  %105 = vmatpush1.msra.mxu0 0.0
  %106 = vmatprep.subr.mxu0 0.0
  %107 = vmatpush1.msra.mxu0 0.0
  %108 = vmatprep.subr.mxu0 0.0
  %109 = vmatpush1.msra.mxu0 0.0
  %110 = vmatprep.subr.mxu0 0.0
  %111 = vmatpush1.msra.mxu0 0.0
  %112 = vmatprep.subr.mxu0 0.0
  %113 = vmatpush1.msra.mxu0 0.0
  %114 = vmatprep.subr.mxu0 0.0
  %115 = vmatpush1.msra.mxu0 0.0
  %116 = vmatprep.subr.mxu0 0.0
  %117 = vmatpush1.msra.mxu0 0.0
  %118 = vmatprep.subr.mxu0 0.0
  %119 = vmatpush1.msra.mxu0 0.0
  %120 = vmatprep.subr.mxu0 0.0
  %121 = vmatpush1.msra.mxu0 0.0
  %122 = vmatprep.subr.mxu0 0.0
  %123 = vmatpush1.msra.mxu0 0.0
  %124 = vmatprep.mubr.f32.mxu0 0.0
  %125 = vmatmul.mubr.f32.gmra.mrb[0].mxu0 %v51
  %v126 = vpop.f32.mrb[0].mxu0
  %v127 = vadd.f32 %v42, %v126
  %v128 = vpop.f32.mrb[0].mxu0
  %v129 = vadd.f32 %v46, %v128
  %130 = vdwg.mxu0
  %v131 = vmax.f32 %v127, 0.0
  %v132 = vmax.f32 %v129, 0.0
  %v133 = vld [vmem:[%s4] sm:$0xff]
  %v134 = vld [vmem:[%s4 + $0x8] sm:$0xff]
  %v135 = vld [vmem:[%s4 + $0x10] sm:$0xff]
  %v136 = vld [vmem:[%s4 + $0x18] sm:$0xff]
  %v137 = vld [vmem:[%s4 + $0x20] sm:$0xff]
  %v138 = vld [vmem:[%s4 + $0x28] sm:$0xff]
  %v139 = vld [vmem:[%s4 + $0x30] sm:$0xff]
  %v140 = vld [vmem:[%s4 + $0x38] sm:$0xff]
  %v141 = vld [vmem:[%s4 + $0x40] sm:$0xff]
  %v142 = vld [vmem:[%s4 + $0x48] sm:$0xff]
  %v143 = vld [vmem:[%s4 + $0x50] sm:$0xff]
  %v144 = vld [vmem:[%s4 + $0x58] sm:$0xff]
  %v145 = vld [vmem:[%s4 + $0x60] sm:$0xff]
  %v146 = vld [vmem:[%s4 + $0x68] sm:$0xff]
  %v147 = vld [vmem:[%s4 + $0x70] sm:$0xff]
  %v148 = vld [vmem:[%s4 + $0x78] sm:$0xff]
  %v149 = vld [vmem:[%s4 + $0x80] sm:$0xff]
  %v150 = vld [vmem:[%s4 + $0x88] sm:$0xff]
  %v151 = vld [vmem:[%s4 + $0x90] sm:$0xff]
  %v152 = vld [vmem:[%s4 + $0x98] sm:$0xff]
  %v153 = vld [vmem:[%s4 + $0xa0] sm:$0xff]
  %v154 = vld [vmem:[%s4 + $0xa8] sm:$0xff]
  %v155 = vld [vmem:[%s4 + $0xb0] sm:$0xff]
  %v156 = vld [vmem:[%s4 + $0xb8] sm:$0xff]
  %v157 = vld [vmem:[%s4 + $0xc0] sm:$0xff]
  %v158 = vld [vmem:[%s4 + $0xc8] sm:$0xff]
  %v159 = vld [vmem:[%s4 + $0xd0] sm:$0xff]
  %v160 = vld [vmem:[%s4 + $0xd8] sm:$0xff]
  %v161 = vld [vmem:[%s4 + $0xe0] sm:$0xff]
  %v162 = vld [vmem:[%s4 + $0xe8] sm:$0xff]
  %v163 = vld [vmem:[%s4 + $0xf0] sm:$0xff]
  %v164 = vld [vmem:[%s4 + $0xf8] sm:$0xff]
  %v165 = vld [vmem:[%s5] sm:$0x3]
  %v167 = vlaneseq
  %v168 = vshrl.u32 %v167, 7
  %v169 = vsub.s32 0, %v168
  %v170 = vrot.slane %v165, %v169
  %v171 = vlaneseq
  %v172 = vshrl.u32 %v171, 7
  %v173 = vsub.s32 1, %v172
  %v174 = vrot.slane %v165, %v173
  %177 = vmatprep.subr.mxu0 %v134
  %178 = vmatpush1.msra.mxu0 %v133
  %179 = vmatprep.subr.mxu0 %v136
  %180 = vmatpush1.msra.mxu0 %v135
  %181 = vmatprep.subr.mxu0 %v138
  %182 = vmatpush1.msra.mxu0 %v137
  %183 = vmatprep.subr.mxu0 %v140
  %184 = vmatpush1.msra.mxu0 %v139
  %185 = vmatprep.subr.mxu0 %v142
  %186 = vmatpush1.msra.mxu0 %v141
  %187 = vmatprep.subr.mxu0 %v144
  %188 = vmatpush1.msra.mxu0 %v143
  %189 = vmatprep.subr.mxu0 %v146
  %190 = vmatpush1.msra.mxu0 %v145
  %191 = vmatprep.subr.mxu0 %v148
  %192 = vmatpush1.msra.mxu0 %v147
  %193 = vmatprep.subr.mxu0 %v150
  %194 = vmatpush1.msra.mxu0 %v149
  %195 = vmatprep.subr.mxu0 %v152
  %196 = vmatpush1.msra.mxu0 %v151
  %197 = vmatprep.subr.mxu0 %v154
  %198 = vmatpush1.msra.mxu0 %v153
  %199 = vmatprep.subr.mxu0 %v156
  %200 = vmatpush1.msra.mxu0 %v155
  %201 = vmatprep.subr.mxu0 %v158
  %202 = vmatpush1.msra.mxu0 %v157
  %203 = vmatprep.subr.mxu0 %v160
  %204 = vmatpush1.msra.mxu0 %v159
  %205 = vmatprep.subr.mxu0 %v162
  %206 = vmatpush1.msra.mxu0 %v161
  %207 = vmatprep.subr.mxu0 %v164
  %208 = vmatpush1.msra.mxu0 %v163
  %209 = vmatprep.subr.mxu0 0.0
  %210 = vmatpush1.msra.mxu0 0.0
  %211 = vmatprep.subr.mxu0 0.0
  %212 = vmatpush1.msra.mxu0 0.0
  %213 = vmatprep.subr.mxu0 0.0
  %214 = vmatpush1.msra.mxu0 0.0
  %215 = vmatprep.subr.mxu0 0.0
  %216 = vmatpush1.msra.mxu0 0.0
  %217 = vmatprep.subr.mxu0 0.0
  %218 = vmatpush1.msra.mxu0 0.0
  %219 = vmatprep.subr.mxu0 0.0
  %220 = vmatpush1.msra.mxu0 0.0
  %221 = vmatprep.subr.mxu0 0.0
  %222 = vmatpush1.msra.mxu0 0.0
  %223 = vmatprep.subr.mxu0 0.0
  %224 = vmatpush1.msra.mxu0 0.0
  %225 = vmatprep.subr.mxu0 0.0
  %226 = vmatpush1.msra.mxu0 0.0
  %227 = vmatprep.subr.mxu0 0.0
  %228 = vmatpush1.msra.mxu0 0.0
  %229 = vmatprep.subr.mxu0 0.0
  %230 = vmatpush1.msra.mxu0 0.0
  %231 = vmatprep.subr.mxu0 0.0
  %232 = vmatpush1.msra.mxu0 0.0
  %233 = vmatprep.subr.mxu0 0.0
  %234 = vmatpush1.msra.mxu0 0.0
  %235 = vmatprep.subr.mxu0 0.0
  %236 = vmatpush1.msra.mxu0 0.0
  %237 = vmatprep.subr.mxu0 0.0
  %238 = vmatpush1.msra.mxu0 0.0
  %239 = vmatprep.subr.mxu0 0.0
  %240 = vmatpush1.msra.mxu0 0.0
  %241 = vmatprep.mubr.f32.mxu0 0.0
  %242 = vmatmul.mubr.f32.gmra.mrb[0].mxu0 %v131
  %v243 = vpop.f32.mrb[0].mxu0
  %v244 = vadd.f32 %v170, %v243
  %v245 = vpop.f32.mrb[0].mxu0
  %v246 = vadd.f32 %v174, %v245
  %247 = vdwg.mxu0
  %249 = vset.pattern.permute.xlu0 0
  %250 = vperm.xlu0 %249, %v32
  %v251 = vpop.permute.xlu0 %250
  %v253 = vmul.f32 %v251, %v244
  %255 = vrot.lane.b32.xlu0 %v253, 32
  %v256 = vpop.permute.xlu0 %255
  %v258 = vadd.f32 %v129, %v256
  %259 = vset.pattern.permute.xlu0 1
  %260 = vperm.xlu0 %259, %v32
  %v261 = vpop.permute.xlu0 %260
  %v263 = vmul.f32 %v261, %v244
  %v264 = vadd.f32 %v258, %v263
  %265 = vset.pattern.permute.xlu0 2
  %266 = vperm.xlu0 %265, %v32
  %v267 = vpop.permute.xlu0 %266
  %v269 = vmul.f32 %v267, %v244
  %271 = vrot.lane.b32.xlu0 %v269, 96
  %v272 = vpop.permute.xlu0 %271
  %v274 = vadd.f32 %v264, %v272
  %275 = vset.pattern.permute.xlu0 3
  %276 = vperm.xlu0 %275, %v32
  %v277 = vpop.permute.xlu0 %276
  %v279 = vmul.f32 %v277, %v244
  %281 = vrot.lane.b32.xlu0 %v279, 64
  %v282 = vpop.permute.xlu0 %281
  %v284 = vadd.f32 %v274, %v282
  %vm285 = vcmp.gt.f32.partialorder %v284, 0.0
  %v286 = vmin.f32 %v284, 0.0
  %v287 = vmul.f32 %v286, 1.442695
  %v288 = vpow.pop %v287
  %v289 = vsub.f32 %v288, 1.0
  %v290 = vsel %vm285, %v284, %v289
  %v291 = vld [vmem:[%s6] sm:$0x1]
  %v293 = vlaneseq
  %v294 = vshrl.u32 %v293, 7
  %v295 = vsub.s32 0, %v294
  %v296 = vrot.slane %v291, %v295
  %v298 = vmul.f32 %v132, %v296
  %vm299 = vcmask 261120
  %v300 = vsel %vm299, %v298, 0.0
  %301 = vadd.xlane.f32.xlu0 %v300
  %v302 = vpop.xlane.xlu0 %301
  %v303 = vld [vmem:[#allocation2] sm:$0x1]
  %v305 = vlaneseq
  %v306 = vshrl.u32 %v305, 7
  %v307 = vsub.s32 0, %v306
  %v308 = vrot.slane %v303, %v307
  %v310 = vadd.f32 %v302, %v308
  %312 = vrot.lane.b32.xlu0 %v246, 32
  %v313 = vpop.permute.xlu0 %312
  %v315 = vmul.f32 %v290, %v313
  %317 = vrot.lane.b32.xlu0 %v315, 96
  %v318 = vpop.permute.xlu0 %317
  %v320 = vsel %vm299, %v318, 0.0
  %321 = vadd.xlane.f32.xlu0 %v320
  %v322 = vpop.xlane.xlu0 %321
  %v323 = vadd.f32 %v322, %v310
  %vm324 = vcmask 7168
  %325 = vst.msk [vmem:[%s8] sm:$0xff] %vm324, %v323
  // Predicated region
  $region34: #{tpu_custom_call.1} parent=0 // pred_check
    _
  $region35: #{tpu_custom_call.1} parent=0 // pred_check_branch
    %327 = sbr.rel (0) target = $region37
  $region36: #{tpu_custom_call.1} parent=0 // pred_region
    _
  $region37: #{tpu_custom_call.1} parent=0 // pred_fallthru
    _
  // Predicated region
  $region38: #{tpu_custom_call.1} parent=0 // pred_check
    _
  $region39: #{tpu_custom_call.1} parent=0 // pred_check_branch
    %329 = sbr.rel (0) target = $region41
  $region40: #{tpu_custom_call.1} parent=0 // pred_region
    _
  $region41: #{tpu_custom_call.1} parent=0 // pred_fallthru
    _

</llo_original>
